<compile_context>
chip_gen: v5e
topology: v5e:2x2
jax: 0.10.0
libtpu: 0.0.40
codegen_flags: <defaults>
</compile_context>

<pallas_src>
import functools

import numpy as np
import jax
import jax.numpy as jnp
from jax import lax
from jax.experimental import pallas as pl
from jax.experimental.pallas import tpu as pltpu


def _round_up(x, m):
    return ((x + m - 1) // m) * m


# ---------------------------------------------------------------------------
# Kernel: accumulate per-(batch, class) spatial sums.
# Grid = (n_par, n_inner):
#   axis 0 "parallel"  : independent pixel slices (megacore)
#   axis 1 "arbitrary" : reduction over pixel tiles within a slice
# Outputs (square=False): a=Σ(x·y·m), b=Σ(x·m), c=Σ(y·m)   (fp/fn by identity)
# Outputs (square=True) : a=Σ(tp²),   b=Σ(fp²), c=Σ(fn²)
# ---------------------------------------------------------------------------
def _dice_stats_kernel(x_ref, gt_ref, *rest, gt_is_onehot, has_mask, square,
                       nonlin, tile_p, n_inner, total_p, has_ragged):
    if has_mask:
        mask_ref, a_ref, b_ref, c_ref = rest
    else:
        a_ref, b_ref, c_ref = rest
        mask_ref = None

    # Initialize the resident accumulators on the first reduction step of this
    # parallel slice.
    @pl.when(pl.program_id(1) == 0)
    def _init():
        a_ref[...] = jnp.zeros_like(a_ref)
        b_ref[...] = jnp.zeros_like(b_ref)
        c_ref[...] = jnp.zeros_like(c_ref)

    tile_idx = pl.program_id(0) * n_inner + pl.program_id(1)

    # Upcast after the DMA (bf16 logits stream at half the HBM bytes).
    x = x_ref[...].astype(jnp.float32)                       # (N, C, T)

    if nonlin == "softmax":
        mx = jnp.max(x, axis=1, keepdims=True)
        e = jnp.exp(x - mx)
        denom = jnp.sum(e, axis=1, keepdims=True)
        x = e * pl.reciprocal(denom, approx=True)            # divide on EUP
    elif nonlin == "sigmoid":
        x = jax.nn.sigmoid(x)

    if gt_is_onehot:
        y = gt_ref[...].astype(jnp.float32)                  # (N, C, T)
    else:
        lab = gt_ref[...].astype(jnp.int32)                  # (N, 1, T)
        cls = lax.broadcasted_iota(jnp.int32, (1, x.shape[1], 1), 1)
        y = (cls == lab).astype(jnp.float32)                 # one-hot, in-kernel

    msk = mask_ref[...].astype(jnp.float32) if has_mask else None   # (N, 1, T)

    def _accumulate(tail):
        if square:
            tp = x * y
            fp = x * (1.0 - y)
            fn = (1.0 - x) * y
            if msk is not None:
                tp, fp, fn = tp * msk, fp * msk, fn * msk
            a, b, c = tp * tp, fp * fp, fn * fn
        else:
            a = x * y                                  # tp (mask applied below)
            b = x if msk is None else x * msk          # Σ(x·m); fp = b − a
            c = y if msk is None else y * msk          # Σ(y·m); fn = c − a
            if msk is not None:
                a = a * msk
        if tail:
            # Ragged last tile (or megacore duplicate tile): zero out-of-range
            # columns with a select so garbage OOB lanes can't inject NaN/Inf.
            col = tile_idx * tile_p + lax.broadcasted_iota(
                jnp.int32, (1, 1, tile_p), 2)
            keep = col < total_p
            a = jnp.where(keep, a, 0.0)
            b = jnp.where(keep, b, 0.0)
            c = jnp.where(keep, c, 0.0)
        a_ref[...] += jnp.sum(a, axis=2)[None]
        b_ref[...] += jnp.sum(b, axis=2)[None]
        c_ref[...] += jnp.sum(c, axis=2)[None]

    if has_ragged:
        full_tiles = total_p // tile_p          # tiles fully inside [0, P)
        is_full = tile_idx < full_tiles

        @pl.when(is_full)
        def _interior():
            _accumulate(tail=False)

        @pl.when(jnp.logical_not(is_full))
        def _tail():
            _accumulate(tail=True)
    else:
        _accumulate(tail=False)


def _choose_tile_p(tile_p, N, C, P, x_nbytes, gt_c, gt_nbytes, mask_nbytes):
    """Derive a lane tile from a conservative VMEM budget (all generations)."""
    p128 = _round_up(max(P, 1), 128)
    if tile_p is None:
        in_col = N * (C * x_nbytes + gt_c * gt_nbytes + mask_nbytes)  # per column
        work_col = 6 * N * C * 4               # generous f32 intermediates
        budget = 24 * 1024 * 1024              # headroom under 32 MiB scoped VMEM
        tile_p = budget // max(1, 2 * in_col + work_col)
        tile_p = min(tile_p, 8192)
    tile_p = max(128, min(int(tile_p), p128))
    return _round_up(tile_p, 128)


def _dice_tp_fp_fn(x_ncp, gt, mask, *, gt_is_onehot, square, nonlin, tile_p):
    """Per-(batch, class) spatial sums tp, fp, fn of shape (N, C)."""
    N, C, P = x_ncp.shape
    gt_c = gt.shape[1]
    tile_p = _choose_tile_p(
        tile_p, N, C, P, jnp.dtype(x_ncp.dtype).itemsize, gt_c,
        jnp.dtype(gt.dtype).itemsize,
        0 if mask is None else jnp.dtype(mask.dtype).itemsize)

    total_tiles = pl.cdiv(P, tile_p)
    # Always 2 parallel slices when there is more than one tile, so both v7x
    # TensorCores get work; harmless (serial) on single-core v5e/v6e.
    n_par = 2 if total_tiles >= 2 else 1
    n_inner = pl.cdiv(total_tiles, n_par)
    # Ragged if the last tile is partial or the cdiv split created duplicates.
    has_ragged = (n_par * n_inner != total_tiles) or (P % tile_p != 0)

    last_blk = total_tiles - 1
    # Clamp so duplicate grid cells re-read the last valid tile (their
    # contribution is zeroed in-kernel via the tail mask).
    pix_map = lambda p, t: (0, 0, jnp.minimum(p * n_inner + t, last_blk))

    in_specs = [pl.BlockSpec((N, C, tile_p), pix_map),
                pl.BlockSpec((N, gt_c, tile_p), pix_map)]
    args = [x_ncp, gt]
    if mask is not None:
        in_specs.append(pl.BlockSpec((N, 1, tile_p), pix_map))
        args.append(mask)

    out_spec = pl.BlockSpec((1, N, C), lambda p, t: (p, 0, 0))
    out_shape = jax.ShapeDtypeStruct((n_par, N, C), jnp.float32)

    kernel = functools.partial(
        _dice_stats_kernel,
        gt_is_onehot=gt_is_onehot,
        has_mask=mask is not None,
        square=square,
        nonlin=nonlin,
        tile_p=tile_p,
        n_inner=n_inner,
        total_p=P,
        has_ragged=has_ragged)

    a, b, c = pl.pallas_call(
        kernel,
        grid=(n_par, n_inner),
        in_specs=in_specs,
        out_specs=[out_spec, out_spec, out_spec],
        out_shape=[out_shape, out_shape, out_shape],
        compiler_params=pltpu.CompilerParams(
            dimension_semantics=("parallel", "arbitrary"),
            vmem_limit_bytes=32 * 1024 * 1024),
    )(*args)

    # Combine the per-parallel-slice partial sums (tiny (n_par, N, C) arrays).
    a = a.sum(axis=0)
    b = b.sum(axis=0)
    c = c.sum(axis=0)
    if square:
        return a, b, c                       # tp², fp², fn² sums
    return a, b - a, c - a                   # tp, fp = Σx·m − tp, fn = Σy·m − tp


# ---------------------------------------------------------------------------
# SoftDiceLoss.forward
# ---------------------------------------------------------------------------
def soft_dice_loss(x, y, loss_mask=None, *, apply_nonlin=None, batch_dice=False,
                   do_bg=True, smooth=1.0, square=False, tile_p=None):
    x = jnp.asarray(x)
    y = jnp.asarray(y)
    N, C = x.shape[0], x.shape[1]
    spatial = x.shape[2:]
    P = int(np.prod(spatial)) if spatial else 1

    nonlin = None
    if apply_nonlin in ("softmax", "sigmoid"):
        nonlin = apply_nonlin            # fused inside the kernel
    elif callable(apply_nonlin):
        # TODO(synk): arbitrary apply_nonlin callables are applied outside the
        # kernel (extra HBM round-trip); pass "softmax"/"sigmoid" to fuse.
        x = apply_nonlin(x)

    # Target handling mirrors get_tp_fp_fn: same shape -> already one-hot,
    # otherwise it is a label map (with or without a singleton channel dim).
    # No dtype upcast here: int8/bool labels and masks stream narrow.
    if y.shape == x.shape:
        gt_is_onehot = True
        gt = y.reshape(N, C, P)
    else:
        gt_is_onehot = False
        gt = y.reshape(N, 1, P)

    x_ncp = x.reshape(N, C, P)           # free reshape, no transpose / cast
    mask = None
    if loss_mask is not None:
        mask = jnp.asarray(loss_mask).reshape(N, 1, P)

    tp, fp, fn = _dice_tp_fp_fn(x_ncp, gt, mask,
                                gt_is_onehot=gt_is_onehot, square=square,
                                nonlin=nonlin, tile_p=tile_p)

    if batch_dice:          # axes = [0] + spatial: also sum over batch
        tp = tp.sum(axis=0)
        fp = fp.sum(axis=0)
        fn = fn.sum(axis=0)

    dc = (2.0 * tp + smooth) / (2.0 * tp + fp + fn + smooth)
    if not do_bg:
        dc = dc[1:] if batch_dice else dc[:, 1:]
    return -jnp.mean(dc)


# ---------------------------------------------------------------------------
# Pure-JAX reference (mirror of the PyTorch code) for correctness checking.
# ---------------------------------------------------------------------------
def _ref_soft_dice(x, y, loss_mask=None, apply_nonlin=None, batch_dice=False,
                   do_bg=True, smooth=1.0, square=False):
    x = jnp.asarray(x, jnp.float32)
    if apply_nonlin == "softmax":
        x = jax.nn.softmax(x, axis=1)
    elif apply_nonlin == "sigmoid":
        x = jax.nn.sigmoid(x)
    elif callable(apply_nonlin):
        x = apply_nonlin(x)
    N, C = x.shape[0], x.shape[1]
    if y.shape == x.shape:
        y_onehot = jnp.asarray(y, jnp.float32)
    else:
        lab = jnp.asarray(y).reshape((N,) + x.shape[2:]).astype(jnp.int32)
        y_onehot = jax.nn.one_hot(lab, C, axis=1, dtype=jnp.float32)
    tp = x * y_onehot
    fp = x * (1.0 - y_onehot)
    fn = (1.0 - x) * y_onehot
    if loss_mask is not None:
        m = jnp.asarray(loss_mask, jnp.float32)
        tp, fp, fn = tp * m, fp * m, fn * m
    if square:
        tp, fp, fn = tp * tp, fp * fp, fn * fn
    axes = tuple(range(2, x.ndim))
    if batch_dice:
        axes = (0,) + axes
    tp = tp.sum(axes)
    fp = fp.sum(axes)
    fn = fn.sum(axes)
    dc = (2.0 * tp + smooth) / (2.0 * tp + fp + fn + smooth)
    if not do_bg:
        dc = dc[1:] if batch_dice else dc[:, 1:]
    return -jnp.mean(dc)


if __name__ == "__main__":
    key = jax.random.PRNGKey(0)
    k1, k2, k3, k4 = jax.random.split(key, 4)
    N, C = 2, 4

    # Case 1: default SoftDiceLoss() config (apply_nonlin=None, batch_dice=False,
    # do_bg=True, square=False), label-map target, auto-derived tile_p.
    H, W = 16, 16
    x1 = jax.random.normal(k1, (N, C, H, W), jnp.float32)
    lab1 = jax.random.randint(k2, (N, H, W), 0, C, jnp.int32)
    l1 = jax.block_until_ready(soft_dice_loss(x1, lab1))
    r1 = _ref_soft_dice(x1, lab1)
    assert np.allclose(np.asarray(l1), np.asarray(r1), rtol=1e-4, atol=1e-4), (
        float(l1), float(r1))

    # Case 2: ragged pixel count (16*17 = 272, not a multiple of 128), int8
    # labels + int8 loss_mask streamed narrow, fused softmax, batch_dice,
    # do_bg=False, square=True, small forced tile to exercise the tail /
    # megacore-duplicate paths. (approx reciprocal -> slightly looser tol.)
    H2, W2 = 16, 17
    x2 = jax.random.normal(k3, (N, C, H2, W2), jnp.float32)
    lab2 = jax.random.randint(k2, (N, H2, W2), 0, C).astype(jnp.int8)
    msk2 = (jax.random.uniform(k4, (N, 1, H2, W2)) > 0.2).astype(jnp.int8)
    l2 = jax.block_until_ready(
        soft_dice_loss(x2, lab2, msk2, apply_nonlin="softmax",
                       batch_dice=True, do_bg=False, square=True, tile_p=128))
    r2 = _ref_soft_dice(x2, lab2, msk2, apply_nonlin="softmax",
                        batch_dice=True, do_bg=False, square=True)
    assert np.allclose(np.asarray(l2), np.asarray(r2), rtol=2e-3, atol=2e-3), (
        float(l2), float(r2))

    # Case 3: one-hot target, fused sigmoid, mask, square=False identity path,
    # do_bg=False, ragged + forced small tile.
    y3 = jax.nn.one_hot(lab2.astype(jnp.int32), C, axis=1, dtype=jnp.float32)
    l3 = jax.block_until_ready(
        soft_dice_loss(x2, y3, msk2, apply_nonlin="sigmoid",
                       do_bg=False, tile_p=128))
    r3 = _ref_soft_dice(x2, y3, msk2, apply_nonlin="sigmoid", do_bg=False)
    assert np.allclose(np.asarray(l3), np.asarray(r3), rtol=1e-4, atol=1e-4), (
        float(l3), float(r3))

    print("KERNEL_OK")
</pallas_src>

<mosaic_0001>
module attributes {stable_mosaic.version = 11 : i64} {
  func.func @_dice_stats_kernel(%arg0: i32, %arg1: i32, %arg2: memref<2x4x256xf32, #tpu.memory_space<vmem>>, %arg3: memref<2x1x256xi32, #tpu.memory_space<vmem>>, %arg4: memref<1x2x4xf32, #tpu.memory_space<vmem>>, %arg5: memref<1x2x4xf32, #tpu.memory_space<vmem>>, %arg6: memref<1x2x4xf32, #tpu.memory_space<vmem>>) attributes {dimension_semantics = [#tpu.dimension_semantics<parallel>, #tpu.dimension_semantics<arbitrary>], iteration_bounds = array<i64: 1, 1>, scalar_prefetch = 0 : i64, scratch_operands = 0 : i64, tpu.core_type = #tpu.core_type<tc>, window_params = [{transform_indices = @transform_0, window_bounds = array<i64: 2, 4, 256>}, {transform_indices = @transform_1, window_bounds = array<i64: 2, 1, 256>}, {transform_indices = @transform_2, window_bounds = array<i64: 1, 2, 4>}, {transform_indices = @transform_3, window_bounds = array<i64: 1, 2, 4>}, {transform_indices = @transform_4, window_bounds = array<i64: 1, 2, 4>}]} {
    %c0_i32 = arith.constant 0 : i32
    %0 = arith.cmpi eq, %arg1, %c0_i32 : i32
    %1 = arith.extui %0 : i1 to i32
    %c0_i32_0 = arith.constant 0 : i32
    %2 = arith.cmpi ne, %1, %c0_i32_0 : i32
    scf.if %2 {
      %cst_26 = arith.constant 0.000000e+00 : f32
      %27 = vector.broadcast %cst_26 : f32 to vector<1x2x4xf32>
      %c0_27 = arith.constant 0 : index
      %c0_28 = arith.constant 0 : index
      %c0_29 = arith.constant 0 : index
      %28 = vector.load %arg4[%c0_27, %c0_28, %c0_29] : memref<1x2x4xf32, #tpu.memory_space<vmem>>, vector<1x2x4xf32>
      tpu.vector_store %arg4[%c0_27, %c0_28, %c0_29], %27 {strides = array<i32>} : memref<1x2x4xf32, #tpu.memory_space<vmem>>, vector<1x2x4xf32>,
      %cst_30 = arith.constant 0.000000e+00 : f32
      %29 = vector.broadcast %cst_30 : f32 to vector<1x2x4xf32>
      %c0_31 = arith.constant 0 : index
      %c0_32 = arith.constant 0 : index
      %c0_33 = arith.constant 0 : index
      %30 = vector.load %arg5[%c0_31, %c0_32, %c0_33] : memref<1x2x4xf32, #tpu.memory_space<vmem>>, vector<1x2x4xf32>
      tpu.vector_store %arg5[%c0_31, %c0_32, %c0_33], %29 {strides = array<i32>} : memref<1x2x4xf32, #tpu.memory_space<vmem>>, vector<1x2x4xf32>,
      %cst_34 = arith.constant 0.000000e+00 : f32
      %31 = vector.broadcast %cst_34 : f32 to vector<1x2x4xf32>
      %c0_35 = arith.constant 0 : index
      %c0_36 = arith.constant 0 : index
      %c0_37 = arith.constant 0 : index
      %32 = vector.load %arg6[%c0_35, %c0_36, %c0_37] : memref<1x2x4xf32, #tpu.memory_space<vmem>>, vector<1x2x4xf32>
      tpu.vector_store %arg6[%c0_35, %c0_36, %c0_37], %31 {strides = array<i32>} : memref<1x2x4xf32, #tpu.memory_space<vmem>>, vector<1x2x4xf32>,
    } else {
    }
    %c0 = arith.constant 0 : index
    %c0_1 = arith.constant 0 : index
    %c0_2 = arith.constant 0 : index
    %3 = vector.load %arg2[%c0, %c0_1, %c0_2] : memref<2x4x256xf32, #tpu.memory_space<vmem>>, vector<2x4x256xf32>
    %c0_3 = arith.constant 0 : index
    %c0_4 = arith.constant 0 : index
    %c0_5 = arith.constant 0 : index
    %4 = vector.load %arg3[%c0_3, %c0_4, %c0_5] : memref<2x1x256xi32, #tpu.memory_space<vmem>>, vector<2x1x256xi32>
    %5 = tpu.iota {dimensions = array<i32: 1>} : vector<1x4x1xi32>
    %6 = vector.broadcast %5 : vector<1x4x1xi32> to vector<2x4x256xi32>
    %7 = vector.broadcast %4 : vector<2x1x256xi32> to vector<2x4x256xi32>
    %8 = arith.cmpi eq, %6, %7 : vector<2x4x256xi32>
    %9 = arith.extui %8 : vector<2x4x256xi1> to vector<2x4x256xi32>
    %10 = arith.sitofp %9 : vector<2x4x256xi32> to vector<2x4x256xf32>
    %11 = arith.mulf %3, %10 : vector<2x4x256xf32>
    %c0_6 = arith.constant 0 : index
    %c0_7 = arith.constant 0 : index
    %c0_8 = arith.constant 0 : index
    %12 = vector.load %arg4[%c0_6, %c0_7, %c0_8] : memref<1x2x4xf32, #tpu.memory_space<vmem>>, vector<1x2x4xf32>
    %cst = arith.constant dense<0.000000e+00> : vector<2x4xf32>
    %13 = vector.multi_reduction <add>, %11, %cst [2] : vector<2x4x256xf32> to vector<2x4xf32>
    %14 = vector.shape_cast %13 : vector<2x4xf32> to vector<1x2x4xf32>
    %15 = arith.addf %12, %14 : vector<1x2x4xf32>
    %c0_9 = arith.constant 0 : index
    %c0_10 = arith.constant 0 : index
    %c0_11 = arith.constant 0 : index
    %16 = vector.load %arg4[%c0_9, %c0_10, %c0_11] : memref<1x2x4xf32, #tpu.memory_space<vmem>>, vector<1x2x4xf32>
    tpu.vector_store %arg4[%c0_9, %c0_10, %c0_11], %15 {strides = array<i32>} : memref<1x2x4xf32, #tpu.memory_space<vmem>>, vector<1x2x4xf32>,
    %c0_12 = arith.constant 0 : index
    %c0_13 = arith.constant 0 : index
    %c0_14 = arith.constant 0 : index
    %17 = vector.load %arg5[%c0_12, %c0_13, %c0_14] : memref<1x2x4xf32, #tpu.memory_space<vmem>>, vector<1x2x4xf32>
    %cst_15 = arith.constant dense<0.000000e+00> : vector<2x4xf32>
    %18 = vector.multi_reduction <add>, %3, %cst_15 [2] : vector<2x4x256xf32> to vector<2x4xf32>
    %19 = vector.shape_cast %18 : vector<2x4xf32> to vector<1x2x4xf32>
    %20 = arith.addf %17, %19 : vector<1x2x4xf32>
    %c0_16 = arith.constant 0 : index
    %c0_17 = arith.constant 0 : index
    %c0_18 = arith.constant 0 : index
    %21 = vector.load %arg5[%c0_16, %c0_17, %c0_18] : memref<1x2x4xf32, #tpu.memory_space<vmem>>, vector<1x2x4xf32>
    tpu.vector_store %arg5[%c0_16, %c0_17, %c0_18], %20 {strides = array<i32>} : memref<1x2x4xf32, #tpu.memory_space<vmem>>, vector<1x2x4xf32>,
    %c0_19 = arith.constant 0 : index
    %c0_20 = arith.constant 0 : index
    %c0_21 = arith.constant 0 : index
    %22 = vector.load %arg6[%c0_19, %c0_20, %c0_21] : memref<1x2x4xf32, #tpu.memory_space<vmem>>, vector<1x2x4xf32>
    %cst_22 = arith.constant dense<0.000000e+00> : vector<2x4xf32>
    %23 = vector.multi_reduction <add>, %10, %cst_22 [2] : vector<2x4x256xf32> to vector<2x4xf32>
    %24 = vector.shape_cast %23 : vector<2x4xf32> to vector<1x2x4xf32>
    %25 = arith.addf %22, %24 : vector<1x2x4xf32>
    %c0_23 = arith.constant 0 : index
    %c0_24 = arith.constant 0 : index
    %c0_25 = arith.constant 0 : index
    %26 = vector.load %arg6[%c0_23, %c0_24, %c0_25] : memref<1x2x4xf32, #tpu.memory_space<vmem>>, vector<1x2x4xf32>
    tpu.vector_store %arg6[%c0_23, %c0_24, %c0_25], %25 {strides = array<i32>} : memref<1x2x4xf32, #tpu.memory_space<vmem>>, vector<1x2x4xf32>,
    return
  }
  func.func @transform_0(%arg0: i32, %arg1: i32) -> (i32, i32, i32) {
    %c1_i32 = arith.constant 1 : i32
    %0 = arith.muli %arg0, %c1_i32 : i32
    %1 = arith.addi %0, %arg1 : i32
    %c0_i32 = arith.constant 0 : i32
    %2 = arith.minsi %1, %c0_i32 : i32
    %c0_i32_0 = arith.constant 0 : i32
    %c0_i32_1 = arith.constant 0 : i32
    %c0_i32_2 = arith.constant 0 : i32
    return %c0_i32_0, %c0_i32_1, %2 : i32, i32, i32
  }
  func.func @transform_1(%arg0: i32, %arg1: i32) -> (i32, i32, i32) {
    %c1_i32 = arith.constant 1 : i32
    %0 = arith.muli %arg0, %c1_i32 : i32
    %1 = arith.addi %0, %arg1 : i32
    %c0_i32 = arith.constant 0 : i32
    %2 = arith.minsi %1, %c0_i32 : i32
    %c0_i32_0 = arith.constant 0 : i32
    %c0_i32_1 = arith.constant 0 : i32
    %c0_i32_2 = arith.constant 0 : i32
    return %c0_i32_0, %c0_i32_1, %2 : i32, i32, i32
  }
  func.func @transform_2(%arg0: i32, %arg1: i32) -> (i32, i32, i32) {
    %c0_i32 = arith.constant 0 : i32
    %c0_i32_0 = arith.constant 0 : i32
    %c0_i32_1 = arith.constant 0 : i32
    return %arg0, %c0_i32, %c0_i32_0 : i32, i32, i32
  }
  func.func @transform_3(%arg0: i32, %arg1: i32) -> (i32, i32, i32) {
    %c0_i32 = arith.constant 0 : i32
    %c0_i32_0 = arith.constant 0 : i32
    %c0_i32_1 = arith.constant 0 : i32
    return %arg0, %c0_i32, %c0_i32_0 : i32, i32, i32
  }
  func.func @transform_4(%arg0: i32, %arg1: i32) -> (i32, i32, i32) {
    %c0_i32 = arith.constant 0 : i32
    %c0_i32_0 = arith.constant 0 : i32
    %c0_i32_1 = arith.constant 0 : i32
    return %arg0, %c0_i32, %c0_i32_0 : i32, i32, i32
  }
}

</mosaic_0001>

<llo_original>
// kernel: tpu_custom_call.1
$region0: #{tpu_custom_call.1}
  #allocation0 [shape = 'u32[]', space=smem, size = 0x4, offset = 0x4, fixed_abs, tag = 'smem constant byte address 0x4 - core index']
  #allocation1 [shape = 'u32[72,128]{1,0:T(1,128)}', space=vmem, size = 0x9000, scoped, tag = 'internal scratch']
  %s0 = inlined_call_operand.hbm [shape: f32[2,4,256], index: 0, kind: input, shape index: {}]
  %s1 = inlined_call_operand.hbm [shape: s32[2,1,256], index: 1, kind: input, shape index: {}]
  %s2 = inlined_call_operand.hbm [shape: f32[1,2,4], index: 2, kind: output, shape index: {0}]
  %s3 = inlined_call_operand.hbm [shape: f32[1,2,4], index: 3, kind: output, shape index: {1}]
  %s4 = inlined_call_operand.hbm [shape: f32[1,2,4], index: 4, kind: output, shape index: {2}]
  %5 = xla_tuple %s2, %s3, %s4
  %s6 = sld [smem:[#allocation0]]
  $region46: #{tpu_custom_call.1} parent=0
    _
  %s8 = ssub.s32 1, %s6
  %s9 = scalar_select 0, %s8, %s6
  $region1: #{tpu_custom_call.1} parent=0
    #allocation2 [shape = 'u8[8192]{0}', space=vmem, size = 0x2000, scoped, tag = 'input window, operand 0, single buffered']
    #allocation3 [shape = 's32[1]{0}', space=sflag, size = 0x4, scoped, tag = 'scoped memory for tpu_custom_call.1']
    #allocation4 [shape = 's32[1]{0}', space=sflag, size = 0x4, scoped, tag = 'scoped memory for tpu_custom_call.1']
    #allocation5 [shape = 'u8[2048]{0}', space=vmem, size = 0x800, scoped, tag = 'input window, operand 1, single buffered']
    #allocation6 [shape = 's32[1]{0}', space=sflag, size = 0x4, scoped, tag = 'scoped memory for tpu_custom_call.1']
    #allocation7 [shape = 'u8[1024]{0}', space=vmem, size = 0x400, scoped, tag = 'output window, operand 0, single buffered']
    #allocation8 [shape = 'u8[1024]{0}', space=vmem, size = 0x400, scoped, tag = 'output window, operand 1, single buffered']
    #allocation9 [shape = 's32[1]{0}', space=sflag, size = 0x4, scoped, tag = 'scoped memory for tpu_custom_call.1']
    #allocation10 [shape = 'u8[1024]{0}', space=vmem, size = 0x400, scoped, tag = 'output window, operand 2, single buffered']
    %10 = vsyncpa [#allocation3], 0
    %11 = vsyncpa [#allocation6], 0
    %12 = vsyncpa [#allocation4], 0
    %13 = vsyncpa [#allocation9], 0
    // Predicated region
    $region2: #{tpu_custom_call.1} parent=1 // pred_check
      _
    $region3: #{tpu_custom_call.1} parent=1 // pred_check_branch
      %15 = sbr.rel (0) target = $region5
    $region4: #{tpu_custom_call.1} parent=1 // pred_region
      %s16 = sadd.s32 0, 0
      %p17 = scmp.lt.s32.totalorder %s16, 0
      %s18 = scalar_select %p17, %s16, 0
      %s19 = smul.u32 2, %s18
      %21 = vsyncadd [#allocation3], 0
      %s22 = smul.addr %s19, 4
      %s23 = scalar_lea.hbm %s0, %s22
      %s24 = sshll.u32 %s23, 4
      %s25 = int_to_ptr.hbm [resolvable:$true] %s24
      %s26 = sshll.u32 [#allocation2], 4
      %s27 = int_to_ptr.vmem [resolvable:$true] %s26
      %32 = dma.hbm_to_vmem [thread:$0]  %s25, 256, %s27, [#allocation3], 128, 128, 8
    $region5: #{tpu_custom_call.1} parent=1 // pred_fallthru
      _
    // Predicated region
    $region6: #{tpu_custom_call.1} parent=1 // pred_check
      _
    $region7: #{tpu_custom_call.1} parent=1 // pred_check_branch
      %34 = sbr.rel (0) target = $region9
    $region8: #{tpu_custom_call.1} parent=1 // pred_region
      %s35 = sadd.s32 0, 0
      %p36 = scmp.lt.s32.totalorder %s35, 0
      %s37 = scalar_select %p36, %s35, 0
      %s38 = smul.u32 2, %s37
      %40 = vsyncadd [#allocation6], 0
      %s41 = scalar_lea.hbm %s1, %s38
      %s42 = sshll.u32 %s41, 4
      %s43 = int_to_ptr.hbm [resolvable:$true] %s42
      %s44 = sshll.u32 [#allocation5], 4
      %s45 = int_to_ptr.vmem [resolvable:$true] %s44
      %50 = dma.hbm_to_vmem [thread:$0]  %s43, 64, %s45, [#allocation6], 32, 32, 2
    $region9: #{tpu_custom_call.1} parent=1 // pred_fallthru
      _
    // Predicated region
    $region10: #{tpu_custom_call.1} parent=1 // pred_check
      _
    $region11: #{tpu_custom_call.1} parent=1 // pred_check_branch
      %52 = sbr.rel (0) target = $region13
    $region12: #{tpu_custom_call.1} parent=1 // pred_region
      %54 = dma.done [#allocation3], 256
    $region13: #{tpu_custom_call.1} parent=1 // pred_fallthru
      _
    // Predicated region
    $region14: #{tpu_custom_call.1} parent=1 // pred_check
      _
    $region15: #{tpu_custom_call.1} parent=1 // pred_check_branch
      %56 = sbr.rel (0) target = $region17
    $region16: #{tpu_custom_call.1} parent=1 // pred_region
      %58 = dma.done [#allocation6], 64
    $region17: #{tpu_custom_call.1} parent=1 // pred_fallthru
      _
    %s59 = sadd.s32 0, 0
    %p60 = scmp.lt.s32.totalorder %s59, 0
    %s61 = scalar_select %p60, %s59, 0
    %s62 = smul.u32 2, %s61
    %s63 = sadd.s32 0, 0
    %p64 = scmp.lt.s32.totalorder %s63, 0
    %s65 = scalar_select %p64, %s63, 0
    %s66 = smul.u32 2, %s65
    %p67 = scmp.eq.s32.totalorder 0, 0
    // Predicated region
    $region18: #{tpu_custom_call.1} parent=1 // pred_check
      %p68 = pneg %p67
    $region19: #{tpu_custom_call.1} parent=1 // pred_check_branch
      %70 = sbr.rel (%p68) target = $region21
    $region20: #{tpu_custom_call.1} parent=1 // pred_region
      %vm71 = vcmask 25600
      %72 = vst.msk [vmem:[#allocation7] sm:$0x3] %vm71, 0.0
      %73 = vst.msk [vmem:[#allocation8] sm:$0x3] %vm71, 0.0
      %74 = vst.msk [vmem:[#allocation10] sm:$0x3] %vm71, 0.0
    $region21: #{tpu_custom_call.1} parent=1 // pred_fallthru
      _
    %v75 = vld [vmem:[#allocation2] sm:$0xff]
    %v76 = vld [vmem:[#allocation2 + $0x8] sm:$0xff]
    %v77 = vld [vmem:[#allocation5] sm:$0x3]
    %v78 = vld [vmem:[#allocation5 + $0x2] sm:$0x3]
    %v79 = vlaneseq
    %v80 = vshrl.u32 %v79, 7
    %v81 = vperm.slane %v77, 0
    %v82 = vperm.slane %v77, 1
    %v83 = vperm.slane %v78, 0
    %v84 = vperm.slane %v78, 1
    %vm85 = vcmp.eq.s32.totalorder %v80, %v81
    %vm86 = vcmp.eq.s32.totalorder %v80, %v82
    %vm87 = vcmp.eq.s32.totalorder %v80, %v83
    %vm88 = vcmp.eq.s32.totalorder %v80, %v84
    %v89 = vsel %vm85, 1, 0
    %v90 = vsel %vm86, 1, 0
    %v91 = vsel %vm87, 1, 0
    %v92 = vsel %vm88, 1, 0
    %v93 = vcvt.s32.f32 %v89
    %v94 = vcvt.s32.f32 %v90
    %v95 = vcvt.s32.f32 %v91
    %v96 = vcvt.s32.f32 %v92
    %v101 = vrot.slane %v94, 4
    %v102 = vrot.slane %v96, 4
    %vm103 = vcmask 1043456
    %v104 = vsel %vm103, %v93, %v101
    %v105 = vsel %vm103, %v95, %v102
    %v108 = vmul.f32 %v75, %v104
    %v109 = vmul.f32 %v76, %v105
    %v110 = vld [vmem:[#allocation7] sm:$0x3]
    %113 = vst [vmem:[#allocation1] ss:$2 sm:$0xff] %v108
    %v114 = vld.sshfl [vmem:[#allocation1] sm:$0xff pattern:$0x75316420]
    %v115 = vld.sshfl [vmem:[#allocation1 + $0x8] sm:$0xff pattern:$0x75316420]
    %s116 = scalar_lea.vmem [#allocation1], 16
    %117 = vst [vmem:[%s116] ss:$2 sm:$0xff] %v109
    %v118 = vld.sshfl [vmem:[#allocation1 + $0x10] sm:$0xff pattern:$0x75316420]
    %v119 = vld.sshfl [vmem:[#allocation1 + $0x18] sm:$0xff pattern:$0x75316420]
    %v124 = vsel %vm103, %v114, 0.0
    %v125 = vsel %vm103, %v115, 0.0
    %v126 = vadd.f32 %v124, %v125
    %127 = vadd.xlane.f32.xlu0 %v126
    %v128 = vpop.xlane.xlu0 %127
    %v129 = vsel %vm103, %v118, 0.0
    %v130 = vsel %vm103, %v119, 0.0
    %v131 = vadd.f32 %v129, %v130
    %132 = vadd.xlane.f32.xlu0 %v131
    %v133 = vpop.xlane.xlu0 %132
    %v136 = vlaneseq
    %v137 = vand.u32 %v136, 127
    %v138 = vperm.slane %v128, %v137
    %v139 = vperm.slane %v133, %v137
    %vm140 = vcmask 1041409
    %v141 = vsel %vm140, %v139, %v138
    %v143 = vadd.f32 %v110, %v141
    %vm144 = vcmask 25600
    %145 = vst.msk [vmem:[#allocation7] sm:$0x3] %vm144, %v143
    %v146 = vld [vmem:[#allocation8] sm:$0x3]
    %149 = vst [vmem:[#allocation1] ss:$2 sm:$0xff] %v75
    %v150 = vld.sshfl [vmem:[#allocation1] sm:$0xff pattern:$0x75316420]
    %v151 = vld.sshfl [vmem:[#allocation1 + $0x8] sm:$0xff pattern:$0x75316420]
    %s152 = scalar_lea.vmem [#allocation1], 16
    %153 = vst [vmem:[%s152] ss:$2 sm:$0xff] %v76
    %v154 = vld.sshfl [vmem:[#allocation1 + $0x10] sm:$0xff pattern:$0x75316420]
    %v155 = vld.sshfl [vmem:[#allocation1 + $0x18] sm:$0xff pattern:$0x75316420]
    %v160 = vsel %vm103, %v150, 0.0
    %v161 = vsel %vm103, %v151, 0.0
    %v162 = vadd.f32 %v160, %v161
    %163 = vadd.xlane.f32.xlu0 %v162
    %v164 = vpop.xlane.xlu0 %163
    %v165 = vsel %vm103, %v154, 0.0
    %v166 = vsel %vm103, %v155, 0.0
    %v167 = vadd.f32 %v165, %v166
    %168 = vadd.xlane.f32.xlu0 %v167
    %v169 = vpop.xlane.xlu0 %168
    %v172 = vperm.slane %v164, %v137
    %v173 = vperm.slane %v169, %v137
    %v174 = vsel %vm140, %v173, %v172
    %v176 = vadd.f32 %v146, %v174
    %177 = vst.msk [vmem:[#allocation8] sm:$0x3] %vm144, %v176
    %v178 = vld [vmem:[#allocation10] sm:$0x3]
    %v179 = vsel %vm103, %v93, 0.0
    %v180 = vsel %vm103, %v94, 0.0
    %v181 = vadd.f32 %v179, %v180
    %182 = vadd.xlane.f32.xlu0 %v181
    %v183 = vpop.xlane.xlu0 %182
    %v184 = vsel %vm103, %v95, 0.0
    %v185 = vsel %vm103, %v96, 0.0
    %v186 = vadd.f32 %v184, %v185
    %187 = vadd.xlane.f32.xlu0 %v186
    %v188 = vpop.xlane.xlu0 %187
    %v191 = vperm.slane %v183, %v137
    %v192 = vperm.slane %v188, %v137
    %v193 = vsel %vm140, %v192, %v191
    %v195 = vadd.f32 %v178, %v193
    %196 = vst.msk [vmem:[#allocation10] sm:$0x3] %vm144, %v195
    // Predicated region
    $region22: #{tpu_custom_call.1} parent=1 // pred_check
      _
    $region23: #{tpu_custom_call.1} parent=1 // pred_check_branch
      %198 = sbr.rel (0) target = $region25
    $region24: #{tpu_custom_call.1} parent=1 // pred_region
      %200 = vsyncadd [#allocation4], 0
      %s202 = sshll.u32 [#allocation7], 4
      %s203 = int_to_ptr.vmem [resolvable:$true] %s202
      %s204 = sshll.u32 %s2, 4
      %s205 = int_to_ptr.hbm [resolvable:$true] %s204
      %207 = dma.vmem_to_hbm [thread:$0]  %s203, 32, %s205, [#allocation4]
    $region25: #{tpu_custom_call.1} parent=1 // pred_fallthru
      _
    // Predicated region
    $region26: #{tpu_custom_call.1} parent=1 // pred_check
      _
    $region27: #{tpu_custom_call.1} parent=1 // pred_check_branch
      %209 = sbr.rel (0) target = $region29
    $region28: #{tpu_custom_call.1} parent=1 // pred_region
      %211 = vsyncadd [#allocation9], 0
      %s213 = sshll.u32 [#allocation8], 4
      %s214 = int_to_ptr.vmem [resolvable:$true] %s213
      %s215 = sshll.u32 %s3, 4
      %s216 = int_to_ptr.hbm [resolvable:$true] %s215
      %218 = dma.vmem_to_hbm [thread:$0]  %s214, 32, %s216, [#allocation9]
    $region29: #{tpu_custom_call.1} parent=1 // pred_fallthru
      _
    // Predicated region
    $region30: #{tpu_custom_call.1} parent=1 // pred_check
      _
    $region31: #{tpu_custom_call.1} parent=1 // pred_check_branch
      %220 = sbr.rel (0) target = $region33
    $region32: #{tpu_custom_call.1} parent=1 // pred_region
      %222 = vsyncadd [#allocation9], 0
      %s224 = sshll.u32 [#allocation10], 4
      %s225 = int_to_ptr.vmem [resolvable:$true] %s224
      %s226 = sshll.u32 %s4, 4
      %s227 = int_to_ptr.hbm [resolvable:$true] %s226
      %229 = dma.vmem_to_hbm [thread:$0]  %s225, 32, %s227, [#allocation9]
    $region33: #{tpu_custom_call.1} parent=1 // pred_fallthru
      _
    // Predicated region
    $region34: #{tpu_custom_call.1} parent=1 // pred_check
      _
    $region35: #{tpu_custom_call.1} parent=1 // pred_check_branch
      %231 = sbr.rel (0) target = $region37
    $region36: #{tpu_custom_call.1} parent=1 // pred_region
      %233 = dma.done [#allocation4], 32
    $region37: #{tpu_custom_call.1} parent=1 // pred_fallthru
      _
    // Predicated region
    $region38: #{tpu_custom_call.1} parent=1 // pred_check
      _
    $region39: #{tpu_custom_call.1} parent=1 // pred_check_branch
      %235 = sbr.rel (0) target = $region41
    $region40: #{tpu_custom_call.1} parent=1 // pred_region
      %237 = dma.done [#allocation9], 32
    $region41: #{tpu_custom_call.1} parent=1 // pred_fallthru
      _
    // Predicated region
    $region42: #{tpu_custom_call.1} parent=1 // pred_check
      _
    $region43: #{tpu_custom_call.1} parent=1 // pred_check_branch
      %239 = sbr.rel (0) target = $region45
    $region44: #{tpu_custom_call.1} parent=1 // pred_region
      %241 = dma.done [#allocation9], 32
    $region45: #{tpu_custom_call.1} parent=1 // pred_fallthru
      _
    %242 = vsyncpa [#allocation3], 1
    %243 = vsyncpa [#allocation6], 1
    %244 = vsyncpa [#allocation4], 1
    %245 = vsyncpa [#allocation9], 1

</llo_original>
